<compile_context>
chip_gen: v6e
topology: v6e:2x2x1
jax: 0.10.0
libtpu: 0.0.40
codegen_flags: <defaults>
</compile_context>

<pallas_src>
import jax
import jax.numpy as jnp
from jax.experimental import pallas as pl
from jax.experimental.pallas import tpu as pltpu


def _round_up(n, m):
    return ((n + m - 1) // m) * m


def _mlp_kernel(x_ref, w1_ref, b1_ref, w2_ref, b2_ref, w3_ref, b3_ref, o_ref):
    # fc1: Linear(num_features -> 128-padded) + ReLU   (Dropout(0.2) identity in eval)
    h1 = jnp.dot(x_ref[...], w1_ref[...], preferred_element_type=jnp.float32)
    h1 = jnp.maximum(h1 + b1_ref[...], 0.0)

    # fc2: Linear(128-padded -> 128) + ReLU            (Dropout(0.5) identity in eval)
    h2 = jnp.dot(h1.astype(w2_ref.dtype), w2_ref[...],
                 preferred_element_type=jnp.float32)
    h2 = jnp.maximum(h2 + b2_ref[...], 0.0)

    # fc3: Linear(128 -> num_classes) + Sigmoid
    if o_ref.shape[-1] == 1:
        # N=1 matmul replaced by VPU multiply + cross-lane reduce (XLU);
        # w3_ref is the weight row [1, 128], b3_ref is a (1,1) SMEM scalar.
        logits = jnp.sum(h2 * w3_ref[...], axis=-1, keepdims=True) + b3_ref[0, 0]
    else:
        logits = jnp.dot(h2.astype(w3_ref.dtype), w3_ref[...],
                         preferred_element_type=jnp.float32) + b3_ref[...]

    o_ref[...] = jax.nn.sigmoid(logits).astype(o_ref.dtype)


def credit_fraud_mlp_forward(x, params, *, tile_b=1024, compute_dtype=jnp.float32):
    """Fused forward pass.

    x: [B, F] float32.  Returns [B, num_classes] float32.
    tile_b: batch tile (rows per grid step); large tiles amortize the ~0.35us
        per-step overhead while staying tiny in VMEM.
    compute_dtype: matmul input dtype (use jnp.bfloat16 on v6e/v7x for MXU
        throughput; accumulation / bias / ReLU / sigmoid remain f32).
    """
    w1, b1, w2, b2, w3, b3 = params
    B, F = x.shape
    H1 = w1.shape[1]
    H2 = w2.shape[1]
    num_classes = w3.shape[1]

    # ---- weight preprocessing: pad fc1 hidden dim to a full lane width -----
    H1P = _round_up(H1, 128)
    if H1P != H1:
        w1 = jnp.pad(w1, ((0, 0), (0, H1P - H1)))
        b1 = jnp.pad(b1, ((0, 0), (0, H1P - H1)))
        w2 = jnp.pad(w2, ((0, H1P - H1), (0, 0)))

    x_c = x.astype(compute_dtype)
    w1 = w1.astype(compute_dtype)
    w2 = w2.astype(compute_dtype)
    b1 = b1.astype(jnp.float32)
    b2 = b2.astype(jnp.float32)

    # ---- batch tiling -------------------------------------------------------
    tile_b = _round_up(max(8, min(tile_b, _round_up(B, 8))), 8)
    B_pad = _round_up(B, tile_b)
    if B_pad != B:
        x_c = jnp.pad(x_c, ((0, B_pad - B), (0, 0)))
    grid = (B_pad // tile_b,)

    def resident(arr):  # full array, VMEM-resident across all grid steps
        return pl.BlockSpec(arr.shape, lambda i: (0,) * arr.ndim)

    if num_classes == 1:
        w3_arg = w3.T.astype(jnp.float32)                  # [1, H2] row, VPU path
        b3_arg = b3.reshape(1, 1).astype(jnp.float32)      # scalar bias
        w3_spec = resident(w3_arg)
        b3_spec = pl.BlockSpec(memory_space=pltpu.MemorySpace.SMEM)
    else:
        w3_arg = w3.astype(compute_dtype)                  # [H2, C] MXU path
        b3_arg = b3.astype(jnp.float32)
        w3_spec = resident(w3_arg)
        b3_spec = resident(b3_arg)

    flops = int(2 * B_pad * (F * H1P + H1P * H2 + H2 * num_classes))
    bytes_accessed = int(
        x_c.dtype.itemsize * B_pad * F                     # stream x
        + 4 * B_pad * num_classes                          # stream out
        + w1.dtype.itemsize * (F * H1P + H1P * H2)         # weights (once)
        + 4 * (H1P + H2)                                   # biases
        + int(w3_arg.size) * w3_arg.dtype.itemsize
        + int(b3_arg.size) * 4
    )

    out = pl.pallas_call(
        _mlp_kernel,
        out_shape=jax.ShapeDtypeStruct((B_pad, num_classes), jnp.float32),
        grid=grid,
        in_specs=[
            pl.BlockSpec((tile_b, F), lambda i: (i, 0)),   # streamed activations
            resident(w1), resident(b1),
            resident(w2), resident(b2),
            w3_spec, b3_spec,
        ],
        out_specs=pl.BlockSpec((tile_b, num_classes), lambda i: (i, 0)),
        compiler_params=pltpu.CompilerParams(
            dimension_semantics=("parallel",),             # megacore on v7x
        ),
        cost_estimate=pl.CostEstimate(
            flops=flops,
            transcendentals=int(B_pad * num_classes),
            bytes_accessed=bytes_accessed,
        ),
    )(x_c, w1, b1, w2, b2, w3_arg, b3_arg)

    return out[:B]


def init_params(key, num_features, num_classes):
    """Deterministic init mirroring PyTorch nn.Linear default (uniform +-1/sqrt(fan_in)).

    Weights are stored as [in, out] (transpose of PyTorch's [out, in])."""
    ks = jax.random.split(key, 6)

    def linear(kw, kb, fan_in, fan_out):
        bound = 1.0 / jnp.sqrt(jnp.float32(fan_in))
        w = jax.random.uniform(kw, (fan_in, fan_out), jnp.float32, -bound, bound)
        b = jax.random.uniform(kb, (1, fan_out), jnp.float32, -bound, bound)
        return w, b

    w1, b1 = linear(ks[0], ks[1], num_features, 64)
    w2, b2 = linear(ks[2], ks[3], 64, 128)
    w3, b3 = linear(ks[4], ks[5], 128, num_classes)
    return (w1, b1, w2, b2, w3, b3)


if __name__ == "__main__":
    num_features = 30   # typical credit-card-fraud tabular feature count
    num_classes = 1

    key = jax.random.PRNGKey(0)
    k_x, k_p, k_x2 = jax.random.split(key, 3)
    params = init_params(k_p, num_features, num_classes)
    w1, b1, w2, b2, w3, b3 = params

    def ref_fwd(xx):
        return jax.nn.sigmoid(
            jnp.maximum(jnp.maximum(xx @ w1 + b1, 0.0) @ w2 + b2, 0.0) @ w3 + b3
        )

    # Small single-tile case.
    x_small = jax.random.normal(k_x, (8, num_features), dtype=jnp.float32)
    out_small = jax.block_until_ready(credit_fraud_mlp_forward(x_small, params))
    assert out_small.shape == (8, num_classes)
    assert jnp.allclose(out_small, ref_fwd(x_small), atol=1e-5, rtol=1e-5)

    # Multi-step grid + batch padding path (100 rows -> 4 tiles of 32, padded to 128).
    x_big = jax.random.normal(k_x2, (100, num_features), dtype=jnp.float32)
    out_big = jax.block_until_ready(
        credit_fraud_mlp_forward(x_big, params, tile_b=32)
    )
    assert out_big.shape == (100, num_classes)
    assert jnp.allclose(out_big, ref_fwd(x_big), atol=1e-5, rtol=1e-5)

    print("KERNEL_OK")
</pallas_src>

<mosaic_0001>
module attributes {stable_mosaic.version = 11 : i64} {
  func.func @_mlp_kernel(%arg0: i32, %arg1: memref<8x30xf32, #tpu.memory_space<vmem>>, %arg2: memref<30x128xf32, #tpu.memory_space<vmem>>, %arg3: memref<1x128xf32, #tpu.memory_space<vmem>>, %arg4: memref<128x128xf32, #tpu.memory_space<vmem>>, %arg5: memref<1x128xf32, #tpu.memory_space<vmem>>, %arg6: memref<1x128xf32, #tpu.memory_space<vmem>>, %arg7: memref<1x1xf32, #tpu.memory_space<smem>>, %arg8: memref<8x1xf32, #tpu.memory_space<vmem>>) attributes {dimension_semantics = [#tpu.dimension_semantics<parallel>], iteration_bounds = array<i64: 1>, scalar_prefetch = 0 : i64, scratch_operands = 0 : i64, tpu.core_type = #tpu.core_type<tc>, window_params = [{transform_indices = @transform_0, window_bounds = array<i64: 8, 30>}, {pipeline_mode = #tpu.pipeline_mode<synchronous>, transform_indices = @transform_1, window_bounds = array<i64: 30, 128>}, {pipeline_mode = #tpu.pipeline_mode<synchronous>, transform_indices = @transform_2, window_bounds = array<i64: 1, 128>}, {pipeline_mode = #tpu.pipeline_mode<synchronous>, transform_indices = @transform_3, window_bounds = array<i64: 128, 128>}, {pipeline_mode = #tpu.pipeline_mode<synchronous>, transform_indices = @transform_4, window_bounds = array<i64: 1, 128>}, {pipeline_mode = #tpu.pipeline_mode<synchronous>, transform_indices = @transform_5, window_bounds = array<i64: 1, 128>}, {transform_indices = @transform_6, window_bounds = array<i64: 1, 1>}, {transform_indices = @transform_7, window_bounds = array<i64: 8, 1>}]} {
    %c0 = arith.constant 0 : index
    %c0_0 = arith.constant 0 : index
    %0 = vector.load %arg1[%c0, %c0_0] : memref<8x30xf32, #tpu.memory_space<vmem>>, vector<8x30xf32>
    %c0_1 = arith.constant 0 : index
    %c0_2 = arith.constant 0 : index
    %1 = vector.load %arg2[%c0_1, %c0_2] : memref<30x128xf32, #tpu.memory_space<vmem>>, vector<30x128xf32>
    %cst = arith.constant dense<0.000000e+00> : vector<8x128xf32>
    %2 = tpu.matmul %0, %1, %cst {dimension_numbers = #tpu.dot_dimension_numbers<[1], [0], [0], [1], [0, 0, 1, 1], [], []>} : vector<8x30xf32>, vector<30x128xf32>, vector<8x128xf32> -> vector<8x128xf32>
    %c0_3 = arith.constant 0 : index
    %c0_4 = arith.constant 0 : index
    %3 = vector.load %arg3[%c0_3, %c0_4] : memref<1x128xf32, #tpu.memory_space<vmem>>, vector<1x128xf32>
    %4 = vector.broadcast %3 : vector<1x128xf32> to vector<8x128xf32>
    %5 = arith.addf %2, %4 : vector<8x128xf32>
    %cst_5 = arith.constant 0.000000e+00 : f32
    %6 = vector.broadcast %cst_5 : f32 to vector<8x128xf32>
    %7 = arith.maximumf %5, %6 : vector<8x128xf32>
    %c0_6 = arith.constant 0 : index
    %c0_7 = arith.constant 0 : index
    %8 = vector.load %arg4[%c0_6, %c0_7] : memref<128x128xf32, #tpu.memory_space<vmem>>, vector<128x128xf32>
    %cst_8 = arith.constant dense<0.000000e+00> : vector<8x128xf32>
    %9 = tpu.matmul %7, %8, %cst_8 {dimension_numbers = #tpu.dot_dimension_numbers<[1], [0], [0], [1], [0, 0, 1, 1], [], []>} : vector<8x128xf32>, vector<128x128xf32>, vector<8x128xf32> -> vector<8x128xf32>
    %c0_9 = arith.constant 0 : index
    %c0_10 = arith.constant 0 : index
    %10 = vector.load %arg5[%c0_9, %c0_10] : memref<1x128xf32, #tpu.memory_space<vmem>>, vector<1x128xf32>
    %11 = vector.broadcast %10 : vector<1x128xf32> to vector<8x128xf32>
    %12 = arith.addf %9, %11 : vector<8x128xf32>
    %cst_11 = arith.constant 0.000000e+00 : f32
    %13 = vector.broadcast %cst_11 : f32 to vector<8x128xf32>
    %14 = arith.maximumf %12, %13 : vector<8x128xf32>
    %c0_12 = arith.constant 0 : index
    %c0_13 = arith.constant 0 : index
    %15 = vector.load %arg6[%c0_12, %c0_13] : memref<1x128xf32, #tpu.memory_space<vmem>>, vector<1x128xf32>
    %16 = vector.broadcast %15 : vector<1x128xf32> to vector<8x128xf32>
    %17 = arith.mulf %14, %16 : vector<8x128xf32>
    %cst_14 = arith.constant dense<0.000000e+00> : vector<8xf32>
    %18 = vector.multi_reduction <add>, %17, %cst_14 [1] : vector<8x128xf32> to vector<8xf32>
    %19 = vector.shape_cast %18 : vector<8xf32> to vector<8x1xf32>
    %c0_15 = arith.constant 0 : index
    %c0_16 = arith.constant 0 : index
    %20 = memref.load %arg7[%c0_15, %c0_16] : memref<1x1xf32, #tpu.memory_space<smem>>
    %21 = vector.broadcast %20 : f32 to vector<8x1xf32>
    %22 = arith.addf %19, %21 : vector<8x1xf32>
    %23 = arith.negf %22 : vector<8x1xf32>
    %24 = math.exp %23 : vector<8x1xf32>
    %cst_17 = arith.constant 1.000000e+00 : f32
    %25 = vector.broadcast %cst_17 : f32 to vector<8x1xf32>
    %26 = arith.addf %25, %24 : vector<8x1xf32>
    %27 = arith.divf %25, %26 : vector<8x1xf32>
    %c0_18 = arith.constant 0 : index
    %c0_19 = arith.constant 0 : index
    %28 = vector.load %arg8[%c0_18, %c0_19] : memref<8x1xf32, #tpu.memory_space<vmem>>, vector<8x1xf32>
    tpu.vector_store %arg8[%c0_18, %c0_19], %27 {strides = array<i32>} : memref<8x1xf32, #tpu.memory_space<vmem>>, vector<8x1xf32>,
    return
  }
  func.func @transform_0(%arg0: i32) -> (i32, i32) {
    %c0_i32 = arith.constant 0 : i32
    %c0_i32_0 = arith.constant 0 : i32
    return %arg0, %c0_i32 : i32, i32
  }
  func.func @transform_1(%arg0: i32) -> (i32, i32) {
    %c0_i32 = arith.constant 0 : i32
    %c0_i32_0 = arith.constant 0 : i32
    %c0_i32_1 = arith.constant 0 : i32
    return %c0_i32, %c0_i32_0 : i32, i32
  }
  func.func @transform_2(%arg0: i32) -> (i32, i32) {
    %c0_i32 = arith.constant 0 : i32
    %c0_i32_0 = arith.constant 0 : i32
    %c0_i32_1 = arith.constant 0 : i32
    return %c0_i32, %c0_i32_0 : i32, i32
  }
  func.func @transform_3(%arg0: i32) -> (i32, i32) {
    %c0_i32 = arith.constant 0 : i32
    %c0_i32_0 = arith.constant 0 : i32
    %c0_i32_1 = arith.constant 0 : i32
    return %c0_i32, %c0_i32_0 : i32, i32
  }
  func.func @transform_4(%arg0: i32) -> (i32, i32) {
    %c0_i32 = arith.constant 0 : i32
    %c0_i32_0 = arith.constant 0 : i32
    %c0_i32_1 = arith.constant 0 : i32
    return %c0_i32, %c0_i32_0 : i32, i32
  }
  func.func @transform_5(%arg0: i32) -> (i32, i32) {
    %c0_i32 = arith.constant 0 : i32
    %c0_i32_0 = arith.constant 0 : i32
    %c0_i32_1 = arith.constant 0 : i32
    return %c0_i32, %c0_i32_0 : i32, i32
  }
  func.func @transform_6(%arg0: i32) -> (i32, i32) {
    %c0_i32 = arith.constant 0 : i32
    %c0_i32_0 = arith.constant 0 : i32
    %c0_i32_1 = arith.constant 0 : i32
    return %c0_i32, %c0_i32_0 : i32, i32
  }
  func.func @transform_7(%arg0: i32) -> (i32, i32) {
    %c0_i32 = arith.constant 0 : i32
    %c0_i32_0 = arith.constant 0 : i32
    return %arg0, %c0_i32 : i32, i32
  }
}

</mosaic_0001>

<llo_original>
// kernel: tpu_custom_call.1
$region0: #{tpu_custom_call.1}
  #allocation0 [shape = 'u32[]', space=smem, size = 0x4, offset = 0x4, fixed_abs, tag = 'smem constant byte address 0x4 - core index']
  #allocation1 [shape = 'u32[144,128]{1,0:T(1,128)}', space=vmem, size = 0x12000, scoped, tag = 'internal scratch']
  #allocation2 [shape = 'f32[1,1]{1,0:T(1,128)S(6)}', space=smem, size = 0x200, scoped, tag = 'scoped memory for tpu_custom_call.1']
  %s0 = inlined_call_operand.hbm [shape: f32[8,30], index: 0, kind: input, shape index: {}]
  %s1 = inlined_call_operand.hbm [shape: f32[30,128], index: 1, kind: input, shape index: {}]
  %s2 = inlined_call_operand.vmem [shape: f32[1,128], index: 2, kind: input, shape index: {}]
  %s3 = inlined_call_operand.hbm [shape: f32[128,128], index: 3, kind: input, shape index: {}]
  %s4 = inlined_call_operand.vmem [shape: f32[1,128], index: 4, kind: input, shape index: {}]
  %s5 = inlined_call_operand.vmem [shape: f32[1,128], index: 5, kind: input, shape index: {}]
  %s6 = inlined_call_operand.<no memory space> [shape: f32[1,1], index: 6, kind: input, shape index: {}]
  %s7 = inlined_call_operand.vmem [shape: f32[8,1], index: 7, kind: output, shape index: {}]
  %s8 = sld [smem:[#allocation0]]
  $region50: #{tpu_custom_call.1} parent=0
    _
  %s10 = ssub.s32 1, %s8
  %s11 = scalar_select 0, %s10, %s8
  %12 = sst [smem:[#allocation2]] %s6
  $region1: #{tpu_custom_call.1} parent=0
    #allocation3 [shape = 'u8[4096]{0}', space=vmem, size = 0x1000, scoped, tag = 'input window, operand 0, single buffered']
    #allocation4 [shape = 's32[1]{0}', space=sflag, size = 0x4, scoped, tag = 'scoped memory for tpu_custom_call.1']
    #allocation5 [shape = 'u8[16384]{0}', space=vmem, size = 0x4000, scoped, tag = 'input window, operand 1, single buffered']
    #allocation6 [shape = 's32[1]{0}', space=sflag, size = 0x4, scoped, tag = 'scoped memory for tpu_custom_call.1']
    #allocation7 [shape = 'u8[65536]{0}', space=vmem, size = 0x10000, scoped, tag = 'input window, operand 3, single buffered']
    %13 = vsyncpa [#allocation4], 0
    %14 = vsyncpa [#allocation6], 0
    // Predicated region
    $region2: #{tpu_custom_call.1} parent=1 // pred_check
      _
    $region3: #{tpu_custom_call.1} parent=1 // pred_check_branch
      %16 = sbr.rel (0) target = $region5
    $region4: #{tpu_custom_call.1} parent=1 // pred_region
      %s18 = ssub.s32 128, 128
      %19 = vsyncadd [#allocation4], %s18
      %s21 = sshll.u32 [#allocation3], 4
      %s22 = int_to_ptr.vmem [resolvable:$true] %s21
      %24 = dma.hbm_to_vmem [thread:$0]  %s0, 128, %s22, [#allocation4]
    $region5: #{tpu_custom_call.1} parent=1 // pred_fallthru
      _
    // Predicated region
    $region6: #{tpu_custom_call.1} parent=1 // pred_check
      _
    $region7: #{tpu_custom_call.1} parent=1 // pred_check_branch
      %26 = sbr.rel (0) target = $region9
    $region8: #{tpu_custom_call.1} parent=1 // pred_region
      %s28 = ssub.s32 512, 512
      %29 = vsyncadd [#allocation6], %s28
      %s30 = sshll.u32 [#allocation5], 4
      %s31 = int_to_ptr.vmem [resolvable:$true] %s30
      %36 = dma.hbm_to_vmem [thread:$0]  %s1, 512, %s31, [#allocation6], 128, 128, 8
    $region9: #{tpu_custom_call.1} parent=1 // pred_fallthru
      _
    // Predicated region
    $region10: #{tpu_custom_call.1} parent=1 // pred_check
      _
    $region11: #{tpu_custom_call.1} parent=1 // pred_check_branch
      %38 = sbr.rel (0) target = $region13
    $region12: #{tpu_custom_call.1} parent=1 // pred_region
      _
    $region13: #{tpu_custom_call.1} parent=1 // pred_fallthru
      _
    // Predicated region
    $region14: #{tpu_custom_call.1} parent=1 // pred_check
      _
    $region15: #{tpu_custom_call.1} parent=1 // pred_check_branch
      %40 = sbr.rel (0) target = $region17
    $region16: #{tpu_custom_call.1} parent=1 // pred_region
      %s42 = ssub.s32 2048, 2048
      %43 = vsyncadd [#allocation6], %s42
      %s44 = sshll.u32 [#allocation7], 4
      %s45 = int_to_ptr.vmem [resolvable:$true] %s44
      %50 = dma.hbm_to_vmem [thread:$0]  %s3, 2048, %s45, [#allocation6], 128, 128, 8
    $region17: #{tpu_custom_call.1} parent=1 // pred_fallthru
      _
    // Predicated region
    $region18: #{tpu_custom_call.1} parent=1 // pred_check
      _
    $region19: #{tpu_custom_call.1} parent=1 // pred_check_branch
      %52 = sbr.rel (0) target = $region21
    $region20: #{tpu_custom_call.1} parent=1 // pred_region
      _
    $region21: #{tpu_custom_call.1} parent=1 // pred_fallthru
      _
    // Predicated region
    $region22: #{tpu_custom_call.1} parent=1 // pred_check
      _
    $region23: #{tpu_custom_call.1} parent=1 // pred_check_branch
      %54 = sbr.rel (0) target = $region25
    $region24: #{tpu_custom_call.1} parent=1 // pred_region
      _
    $region25: #{tpu_custom_call.1} parent=1 // pred_fallthru
      _
    // Predicated region
    $region26: #{tpu_custom_call.1} parent=1 // pred_check
      _
    $region27: #{tpu_custom_call.1} parent=1 // pred_check_branch
      %56 = sbr.rel (0) target = $region29
    $region28: #{tpu_custom_call.1} parent=1 // pred_region
      _
    $region29: #{tpu_custom_call.1} parent=1 // pred_fallthru
      _
    // Predicated region
    $region30: #{tpu_custom_call.1} parent=1 // pred_check
      _
    $region31: #{tpu_custom_call.1} parent=1 // pred_check_branch
      %58 = sbr.rel (0) target = $region33
    $region32: #{tpu_custom_call.1} parent=1 // pred_region
      %59 = dma.done [#allocation4], 128
    $region33: #{tpu_custom_call.1} parent=1 // pred_fallthru
      _
    // Predicated region
    $region34: #{tpu_custom_call.1} parent=1 // pred_check
      _
    $region35: #{tpu_custom_call.1} parent=1 // pred_check_branch
      %61 = sbr.rel (0) target = $region37
    $region36: #{tpu_custom_call.1} parent=1 // pred_region
      %62 = dma.done [#allocation6], 512
    $region37: #{tpu_custom_call.1} parent=1 // pred_fallthru
      _
    // Predicated region
    $region38: #{tpu_custom_call.1} parent=1 // pred_check
      _
    $region39: #{tpu_custom_call.1} parent=1 // pred_check_branch
      %64 = sbr.rel (0) target = $region41
    $region40: #{tpu_custom_call.1} parent=1 // pred_region
      %65 = dma.done [#allocation6], 2048
    $region41: #{tpu_custom_call.1} parent=1 // pred_fallthru
      _
    %v66 = vld [vmem:[#allocation3] sm:$0xff]
    %v67 = vld [vmem:[#allocation5] sm:$0xff]
    %v68 = vld [vmem:[#allocation5 + $0x8] sm:$0xff]
    %v69 = vld [vmem:[#allocation5 + $0x10] sm:$0xff]
    %v70 = vld [vmem:[#allocation5 + $0x18] sm:$0x3f]
    %v71 = vld [vmem:[%s2] sm:$0x1]
    %v73 = vlaneseq
    %v74 = vshrl.u32 %v73, 7
    %v75 = vsub.s32 0, %v74
    %v76 = vrot.slane %v71, %v75
    %vm78 = vcmask 244736
    %v80 = vsel %vm78, %v66, 0
    %vm82 = vcmask 1045504
    %v84 = vsel %vm82, %v70, 0
    %86 = vmatprep.subr.mxu0 0.0
    %87 = vmatpush1.msra.mxu0 0.0
    %88 = vmatprep.subr.mxu0 0.0
    %89 = vmatpush1.msra.mxu0 0.0
    %90 = vmatprep.subr.mxu0 0.0
    %91 = vmatpush1.msra.mxu0 0.0
    %92 = vmatprep.subr.mxu0 0.0
    %93 = vmatpush1.msra.mxu0 0.0
    %94 = vmatprep.subr.mxu0 0.0
    %95 = vmatpush1.msra.mxu0 0.0
    %96 = vmatprep.subr.mxu0 0.0
    %97 = vmatpush1.msra.mxu0 0.0
    %98 = vmatprep.subr.mxu0 0.0
    %99 = vmatpush1.msra.mxu0 0.0
    %100 = vmatprep.subr.mxu0 0.0
    %101 = vmatpush1.msra.mxu0 0.0
    %102 = vmatprep.subr.mxu0 0.0
    %103 = vmatpush1.msra.mxu0 0.0
    %104 = vmatprep.subr.mxu0 0.0
    %105 = vmatpush1.msra.mxu0 0.0
    %106 = vmatprep.subr.mxu0 0.0
    %107 = vmatpush1.msra.mxu0 0.0
    %108 = vmatprep.subr.mxu0 0.0
    %109 = vmatpush1.msra.mxu0 0.0
    %110 = vmatprep.subr.mxu0 0.0
    %111 = vmatpush1.msra.mxu0 %v84
    %112 = vmatprep.subr.mxu0 0.0
    %113 = vmatpush1.msra.mxu0 %v69
    %114 = vmatprep.subr.mxu0 0.0
    %115 = vmatpush1.msra.mxu0 %v68
    %116 = vmatprep.subr.mxu0 0.0
    %117 = vmatpush1.msra.mxu0 %v67
    %118 = vmatprep.subr.mxu0 0.0
    %119 = vmatpush2.msra.mxu0 0.0
    %120 = vmatprep.subr.mxu0 0.0
    %121 = vmatpush2.msra.mxu0 0.0
    %122 = vmatprep.subr.mxu0 0.0
    %123 = vmatpush2.msra.mxu0 0.0
    %124 = vmatprep.subr.mxu0 0.0
    %125 = vmatpush2.msra.mxu0 0.0
    %126 = vmatprep.subr.mxu0 0.0
    %127 = vmatpush2.msra.mxu0 0.0
    %128 = vmatprep.subr.mxu0 0.0
    %129 = vmatpush2.msra.mxu0 0.0
    %130 = vmatprep.subr.mxu0 0.0
    %131 = vmatpush2.msra.mxu0 0.0
    %132 = vmatprep.subr.mxu0 0.0
    %133 = vmatpush2.msra.mxu0 0.0
    %134 = vmatprep.subr.mxu0 0.0
    %135 = vmatpush2.msra.mxu0 0.0
    %136 = vmatprep.subr.mxu0 0.0
    %137 = vmatpush2.msra.mxu0 0.0
    %138 = vmatprep.subr.mxu0 0.0
    %139 = vmatpush2.msra.mxu0 0.0
    %140 = vmatprep.subr.mxu0 0.0
    %141 = vmatpush2.msra.mxu0 0.0
    %142 = vmatprep.subr.mxu0 0.0
    %143 = vmatpush2.msra.mxu0 0.0
    %144 = vmatprep.subr.mxu0 0.0
    %145 = vmatpush2.msra.mxu0 0.0
    %146 = vmatprep.subr.mxu0 0.0
    %147 = vmatpush2.msra.mxu0 0.0
    %148 = vmatprep.subr.mxu0 0.0
    %149 = vmatpush2.msra.mxu0 0.0
    %150 = vmatprep.mubr.f32.mxu0 0.0
    %151 = vmatmul.mubr.f32.gmra.mxu0 %v80
    %v152 = vpop.f32.mrf.mxu0
    %v153 = vadd.f32 %v76, %v152
    %v154 = vpop.f32.mrf.mxu0
    %155 = vdwg.mxu0
    %v156 = vmax.f32 %v153, 0.0
    %v157 = vld [vmem:[#allocation7] sm:$0xff]
    %v158 = vld [vmem:[#allocation7 + $0x8] sm:$0xff]
    %v159 = vld [vmem:[#allocation7 + $0x10] sm:$0xff]
    %v160 = vld [vmem:[#allocation7 + $0x18] sm:$0xff]
    %v161 = vld [vmem:[#allocation7 + $0x20] sm:$0xff]
    %v162 = vld [vmem:[#allocation7 + $0x28] sm:$0xff]
    %v163 = vld [vmem:[#allocation7 + $0x30] sm:$0xff]
    %v164 = vld [vmem:[#allocation7 + $0x38] sm:$0xff]
    %v165 = vld [vmem:[#allocation7 + $0x40] sm:$0xff]
    %v166 = vld [vmem:[#allocation7 + $0x48] sm:$0xff]
    %v167 = vld [vmem:[#allocation7 + $0x50] sm:$0xff]
    %v168 = vld [vmem:[#allocation7 + $0x58] sm:$0xff]
    %v169 = vld [vmem:[#allocation7 + $0x60] sm:$0xff]
    %v170 = vld [vmem:[#allocation7 + $0x68] sm:$0xff]
    %v171 = vld [vmem:[#allocation7 + $0x70] sm:$0xff]
    %v172 = vld [vmem:[#allocation7 + $0x78] sm:$0xff]
    %v173 = vld [vmem:[%s4] sm:$0x1]
    %v175 = vlaneseq
    %v176 = vshrl.u32 %v175, 7
    %v177 = vsub.s32 0, %v176
    %v178 = vrot.slane %v173, %v177
    %180 = vmatprep.subr.mxu0 0.0
    %181 = vmatpush1.msra.mxu0 %v172
    %182 = vmatprep.subr.mxu0 0.0
    %183 = vmatpush1.msra.mxu0 %v171
    %184 = vmatprep.subr.mxu0 0.0
    %185 = vmatpush1.msra.mxu0 %v170
    %186 = vmatprep.subr.mxu0 0.0
    %187 = vmatpush1.msra.mxu0 %v169
    %188 = vmatprep.subr.mxu0 0.0
    %189 = vmatpush1.msra.mxu0 %v168
    %190 = vmatprep.subr.mxu0 0.0
    %191 = vmatpush1.msra.mxu0 %v167
    %192 = vmatprep.subr.mxu0 0.0
    %193 = vmatpush1.msra.mxu0 %v166
    %194 = vmatprep.subr.mxu0 0.0
    %195 = vmatpush1.msra.mxu0 %v165
    %196 = vmatprep.subr.mxu0 0.0
    %197 = vmatpush1.msra.mxu0 %v164
    %198 = vmatprep.subr.mxu0 0.0
    %199 = vmatpush1.msra.mxu0 %v163
    %200 = vmatprep.subr.mxu0 0.0
    %201 = vmatpush1.msra.mxu0 %v162
    %202 = vmatprep.subr.mxu0 0.0
    %203 = vmatpush1.msra.mxu0 %v161
    %204 = vmatprep.subr.mxu0 0.0
    %205 = vmatpush1.msra.mxu0 %v160
    %206 = vmatprep.subr.mxu0 0.0
    %207 = vmatpush1.msra.mxu0 %v159
    %208 = vmatprep.subr.mxu0 0.0
    %209 = vmatpush1.msra.mxu0 %v158
    %210 = vmatprep.subr.mxu0 0.0
    %211 = vmatpush1.msra.mxu0 %v157
    %212 = vmatprep.subr.mxu0 0.0
    %213 = vmatpush2.msra.mxu0 0.0
    %214 = vmatprep.subr.mxu0 0.0
    %215 = vmatpush2.msra.mxu0 0.0
    %216 = vmatprep.subr.mxu0 0.0
    %217 = vmatpush2.msra.mxu0 0.0
    %218 = vmatprep.subr.mxu0 0.0
    %219 = vmatpush2.msra.mxu0 0.0
    %220 = vmatprep.subr.mxu0 0.0
    %221 = vmatpush2.msra.mxu0 0.0
    %222 = vmatprep.subr.mxu0 0.0
    %223 = vmatpush2.msra.mxu0 0.0
    %224 = vmatprep.subr.mxu0 0.0
    %225 = vmatpush2.msra.mxu0 0.0
    %226 = vmatprep.subr.mxu0 0.0
    %227 = vmatpush2.msra.mxu0 0.0
    %228 = vmatprep.subr.mxu0 0.0
    %229 = vmatpush2.msra.mxu0 0.0
    %230 = vmatprep.subr.mxu0 0.0
    %231 = vmatpush2.msra.mxu0 0.0
    %232 = vmatprep.subr.mxu0 0.0
    %233 = vmatpush2.msra.mxu0 0.0
    %234 = vmatprep.subr.mxu0 0.0
    %235 = vmatpush2.msra.mxu0 0.0
    %236 = vmatprep.subr.mxu0 0.0
    %237 = vmatpush2.msra.mxu0 0.0
    %238 = vmatprep.subr.mxu0 0.0
    %239 = vmatpush2.msra.mxu0 0.0
    %240 = vmatprep.subr.mxu0 0.0
    %241 = vmatpush2.msra.mxu0 0.0
    %242 = vmatprep.subr.mxu0 0.0
    %243 = vmatpush2.msra.mxu0 0.0
    %244 = vmatprep.mubr.f32.mxu0 0.0
    %245 = vmatmul.mubr.f32.gmra.mxu0 %v156
    %v246 = vpop.f32.mrf.mxu0
    %v247 = vadd.f32 %v178, %v246
    %v248 = vpop.f32.mrf.mxu0
    %249 = vdwg.mxu0
    %v250 = vmax.f32 %v247, 0.0
    %v251 = vld [vmem:[%s5] sm:$0x1]
    %v253 = vlaneseq
    %v254 = vshrl.u32 %v253, 7
    %v255 = vsub.s32 0, %v254
    %v256 = vrot.slane %v251, %v255
    %v258 = vmul.f32 %v250, %v256
    %259 = vadd.xlane.f32.xlu0 %v258
    %v260 = vpop.xlane.xlu0 %259
    %s261 = sld [smem:[#allocation2]]
    %v262 = vstv %s261
    %v263 = vadd.f32 %v260, %v262
    %v264 = vxor.u32 %v263, 2147483648
    %v265 = vmul.f32 %v264, 1.442695
    %v266 = vpow.pop %v265
    %v267 = vadd.f32 %v266, 1.0
    %v268 = vrcp.pop %v267
    %v269 = vmul.f32 1.0, %v268
    %vm270 = vcmask 7168
    %271 = vst.msk [vmem:[%s7] sm:$0xff] %vm270, %v269
    // Predicated region
    $region42: #{tpu_custom_call.1} parent=1 // pred_check
      _
    $region43: #{tpu_custom_call.1} parent=1 // pred_check_branch
      %273 = sbr.rel (0) target = $region45
    $region44: #{tpu_custom_call.1} parent=1 // pred_region
      _
    $region45: #{tpu_custom_call.1} parent=1 // pred_fallthru
      _
    // Predicated region
    $region46: #{tpu_custom_call.1} parent=1 // pred_check
      _
    $region47: #{tpu_custom_call.1} parent=1 // pred_check_branch
      %275 = sbr.rel (0) target = $region49
    $region48: #{tpu_custom_call.1} parent=1 // pred_region
      _
    $region49: #{tpu_custom_call.1} parent=1 // pred_fallthru
      _
    %276 = vsyncpa [#allocation4], 1
    %277 = vsyncpa [#allocation6], 1

</llo_original>
